<compile_context>
chip_gen: v5e
topology: v5e:2x2
jax: 0.10.0
libtpu: 0.0.40
codegen_flags: <defaults>
</compile_context>

<pallas_src>
import functools

import jax
import jax.numpy as jnp
from jax.experimental import pallas as pl
from jax.experimental.pallas import tpu as pltpu

NEG_SLOPE = 0.01  # torch.nn.LeakyReLU default negative_slope
LANE = 128
MiB = 1024 * 1024


def _round_up(x, m):
    return (x + m - 1) // m * m


def _cdiv(a, b):
    return -(-a // b)


def _vmem_capacity_bytes():
    """Physical VMEM of the current TPU (64 MiB on v7x, 128 MiB on v5e/v6e)."""
    try:
        return int(pltpu.get_tpu_info().vmem_capacity_bytes)
    except Exception:
        return 64 * MiB  # conservative fallback (v7x per-TC VMEM)


def _leaky_relu(v):
    # max(v, 0.01*v) == LeakyReLU(v) for slope < 1; lowers to vmul+vmax.
    return jnp.maximum(v, NEG_SLOPE * v)


def _resident_spec(shape):
    """Constant-index (VMEM-resident) BlockSpec, single-buffered to save VMEM."""
    try:
        return pl.BlockSpec(shape, lambda i: (0, 0), pipeline_mode=pl.Buffered(1))
    except Exception:  # older jax without pipeline_mode / Buffered
        return pl.BlockSpec(shape, lambda i: (0, 0))


def mlp4_kernel(x_ref,
                w1_ref, b1_ref,
                w2_ref, b2_ref,
                w3_ref, b3_ref,
                w4_ref, b4_ref,
                o_ref):
    """Fused forward: 3x (Linear + LeakyReLU) + final Linear (with bias).

    MXU matmuls run in the weights' storage dtype (f32 or bf16) with f32
    accumulation; bias add (f32 biases) + LeakyReLU run on the VPU in f32.
    """
    cdt = w1_ref.dtype  # MXU operand dtype

    h = x_ref[...].astype(cdt)  # no-op when x and weights are already f32
    h = _leaky_relu(
        jnp.dot(h, w1_ref[...], preferred_element_type=jnp.float32) + b1_ref[...])
    h = _leaky_relu(
        jnp.dot(h.astype(cdt), w2_ref[...], preferred_element_type=jnp.float32)
        + b2_ref[...])
    h = _leaky_relu(
        jnp.dot(h.astype(cdt), w3_ref[...], preferred_element_type=jnp.float32)
        + b3_ref[...])
    out = (jnp.dot(h.astype(cdt), w4_ref[...], preferred_element_type=jnp.float32)
           + b4_ref[...])
    o_ref[...] = out.astype(o_ref.dtype)


def prepare_params(params, weight_dtype=None):
    """Pad/cast parameters ONCE (hoisted out of the per-call forward).

    Weights: transposed (in_features, out_features), zero-padded to lane multiples of
    128, optionally cast to bf16. Biases: (1, out_features), zero-padded, ALWAYS f32.
    """
    d_in, d_h = params["w1"].shape
    d_out = params["w4"].shape[1]
    d_in_p, d_h_p, d_out_p = (_round_up(d, LANE) for d in (d_in, d_h, d_out))

    cap = _vmem_capacity_bytes()
    n_w_elems = d_in_p * d_h_p + 2 * d_h_p * d_h_p + d_h_p * d_out_p
    if weight_dtype is None:
        # Keep f32 weights resident only if they fit comfortably (<~40% of VMEM);
        # otherwise store bf16 (bf16 MXU path on v6e/v7x, half the weight DMA/VMEM).
        weight_dtype = jnp.float32 if n_w_elems * 4 <= int(0.4 * cap) else jnp.bfloat16
    # TODO(synk): fp8 storage (per-channel scales) for w2/w3 on v7x, and a K-streamed
    # ("arbitrary") grid axis when even bf16 resident weights exceed ~48 MiB, instead
    # of keeping all four layers resident.

    def pad_w(w, rp, cp):
        return jnp.pad(w, ((0, rp - w.shape[0]), (0, cp - w.shape[1]))).astype(weight_dtype)

    def pad_b(b, cp):
        return jnp.pad(b, ((0, 0), (0, cp - b.shape[1]))).astype(jnp.float32)

    padded = {
        "w1": pad_w(params["w1"], d_in_p, d_h_p), "b1": pad_b(params["b1"], d_h_p),
        "w2": pad_w(params["w2"], d_h_p, d_h_p), "b2": pad_b(params["b2"], d_h_p),
        "w3": pad_w(params["w3"], d_h_p, d_h_p), "b3": pad_b(params["b3"], d_h_p),
        "w4": pad_w(params["w4"], d_in_p if False else d_h_p, d_out_p),
        "b4": pad_b(params["b4"], d_out_p),
    }
    meta = dict(d_in=d_in, d_h=d_h, d_out=d_out,
                d_in_p=d_in_p, d_h_p=d_h_p, d_out_p=d_out_p,
                weight_itemsize=jnp.dtype(weight_dtype).itemsize,
                vmem_cap=cap)
    return padded, meta


def _choose_tile_b(batch, meta):
    d_max = max(meta["d_in_p"], meta["d_h_p"], meta["d_out_p"])
    # v5e/v6e (>=96 MiB VMEM) + small feature dims: larger tiles amortize the
    # ~0.35 us/step overhead.  v7x (64 MiB) or large features: stay at 256 so
    # intermediates fit and the batch grid keeps >=2 steps for the two TCs.
    target = 512 if (meta["vmem_cap"] >= 96 * MiB and d_max <= 512) else 256
    target = min(target, _round_up(batch, 8))
    n_steps = _cdiv(batch, target)
    # Balance rows across steps -> <8 padded rows even for awkward batch sizes.
    return _round_up(_cdiv(batch, n_steps), 8)


def _vmem_limit_bytes(tile_b, meta, out_itemsize):
    d_in_p, d_h_p, d_out_p = meta["d_in_p"], meta["d_h_p"], meta["d_out_p"]
    wi = meta["weight_itemsize"]
    weights = (d_in_p * d_h_p + 2 * d_h_p * d_h_p + d_h_p * d_out_p) * wi  # Buffered(1)
    biases = (3 * d_h_p + d_out_p) * 4
    x_tile = 2 * tile_b * d_in_p * 4               # double-buffered f32 input tile
    out_tile = 2 * tile_b * d_out_p * out_itemsize  # double-buffered output tile
    h_tmp = 4 * tile_b * max(d_in_p, d_h_p, d_out_p) * 4  # in-flight f32 temporaries
    total = weights + biases + x_tile + out_tile + h_tmp
    limit = max(int(total * 1.3) + 2 * MiB, 32 * MiB)      # ~30% headroom, 32 MiB floor
    return min(limit, meta["vmem_cap"])


@functools.partial(jax.jit,
                   static_argnames=("tile_b", "d_out", "vmem_limit", "out_dtype"))
def _forward_impl(x, params_p, *, tile_b, d_out, vmem_limit, out_dtype):
    batch, d_in = x.shape
    d_in_p, d_h_p = params_p["w1"].shape
    d_out_p = params_p["w4"].shape[1]
    batch_p = _round_up(batch, tile_b)

    x_p = jnp.pad(x, ((0, batch_p - batch), (0, d_in_p - d_in)))

    grid = (batch_p // tile_b,)
    x_spec = pl.BlockSpec((tile_b, d_in_p), lambda i: (i, 0))
    out_spec = pl.BlockSpec((tile_b, d_out_p), lambda i: (i, 0))

    w_and_b = (params_p["w1"], params_p["b1"], params_p["w2"], params_p["b2"],
               params_p["w3"], params_p["b3"], params_p["w4"], params_p["b4"])
    in_specs = [x_spec] + [_resident_spec(a.shape) for a in w_and_b]

    flops = 2 * batch_p * (d_in_p * d_h_p + 2 * d_h_p * d_h_p + d_h_p * d_out_p)
    bytes_accessed = (x_p.size * x_p.dtype.itemsize
                      + sum(int(a.size) * a.dtype.itemsize for a in w_and_b)
                      + batch_p * d_out_p * jnp.dtype(out_dtype).itemsize)

    out_p = pl.pallas_call(
        mlp4_kernel,
        out_shape=jax.ShapeDtypeStruct((batch_p, d_out_p), out_dtype),
        grid=grid,
        in_specs=in_specs,
        out_specs=out_spec,
        compiler_params=pltpu.CompilerParams(
            dimension_semantics=("parallel",),     # megacore sharding on v7x
            vmem_limit_bytes=vmem_limit),
        cost_estimate=pl.CostEstimate(
            flops=flops, transcendentals=0, bytes_accessed=bytes_accessed),
    )(x_p, *w_and_b)

    # Slice the zero-padded rows/columns back off.
    return out_p[:batch, :d_out]


def generator_forward(x, prepared, out_dtype=jnp.float32):
    """x: (batch, input_dim) f32.  prepared: output of prepare_params()."""
    params_p, meta = prepared
    tile_b = _choose_tile_b(x.shape[0], meta)
    vmem_limit = _vmem_limit_bytes(tile_b, meta, jnp.dtype(out_dtype).itemsize)
    return _forward_impl(x, params_p, tile_b=tile_b, d_out=meta["d_out"],
                         vmem_limit=vmem_limit, out_dtype=out_dtype)


def init_params(key, input_dim, intern_dim, output_dim):
    """Deterministic init mimicking nn.Linear's U(-1/sqrt(fan_in), 1/sqrt(fan_in)).

    Weights stored transposed: (in_features, out_features). Biases: (1, out_features).
    """
    dims = [(input_dim, intern_dim),
            (intern_dim, intern_dim),
            (intern_dim, intern_dim),
            (intern_dim, output_dim)]
    params = {}
    for i, (fan_in, fan_out) in enumerate(dims, start=1):
        key, kw, kb = jax.random.split(key, 3)
        bound = 1.0 / jnp.sqrt(jnp.float32(fan_in))
        params[f"w{i}"] = jax.random.uniform(
            kw, (fan_in, fan_out), jnp.float32, minval=-bound, maxval=bound)
        params[f"b{i}"] = jax.random.uniform(
            kb, (1, fan_out), jnp.float32, minval=-bound, maxval=bound)
    return params


def reference_forward(x, params, weight_dtype=jnp.float32):
    """Pure-JAX reference with identical dtype handling (weights' dtype on the MXU,
    f32 accumulation, f32 biases, f32 LeakyReLU)."""
    h = x
    for i in range(1, 5):
        w = params[f"w{i}"].astype(weight_dtype)
        b = params[f"b{i}"].astype(jnp.float32)
        h = jnp.dot(h.astype(weight_dtype), w, preferred_element_type=jnp.float32) + b
        if i < 4:
            h = jnp.maximum(h, NEG_SLOPE * h)
    return h


if __name__ == "__main__":
    batch, input_dim, intern_dim, output_dim = 8, 32, 64, 16

    key = jax.random.PRNGKey(0)
    key, kx = jax.random.split(key)
    x = jax.random.normal(kx, (batch, input_dim), jnp.float32)
    params = init_params(key, input_dim, intern_dim, output_dim)

    # --- f32 weight path (tight tolerance) ---
    prep_f32 = prepare_params(params, weight_dtype=jnp.float32)
    out = jax.block_until_ready(generator_forward(x, prep_f32))
    ref = reference_forward(x, params, jnp.float32)
    assert out.shape == (batch, output_dim), out.shape
    assert jnp.allclose(out, ref, atol=1e-4, rtol=1e-4), \
        float(jnp.max(jnp.abs(out - ref)))

    # --- bf16 weight path (default choice for large models on v6e/v7x; biases stay f32) ---
    prep_bf16 = prepare_params(params, weight_dtype=jnp.bfloat16)
    out_bf = jax.block_until_ready(generator_forward(x, prep_bf16))
    ref_bf = reference_forward(x, params, jnp.bfloat16)
    assert out_bf.shape == (batch, output_dim), out_bf.shape
    assert jnp.allclose(out_bf, ref_bf, atol=2e-2, rtol=2e-2), \
        float(jnp.max(jnp.abs(out_bf - ref_bf)))

    # --- awkward batch size: balanced tile_b keeps padding to <8 rows ---
    xb = jax.random.normal(kx, (300, input_dim), jnp.float32)
    out_b = jax.block_until_ready(generator_forward(xb, prep_f32))
    ref_b = reference_forward(xb, params, jnp.float32)
    assert out_b.shape == (300, output_dim), out_b.shape
    assert jnp.allclose(out_b, ref_b, atol=1e-4, rtol=1e-4), \
        float(jnp.max(jnp.abs(out_b - ref_b)))

    print("KERNEL_OK")
</pallas_src>

<mosaic_0001>
module attributes {stable_mosaic.version = 11 : i64} {
  func.func @mlp4_kernel(%arg0: i32, %arg1: memref<8x128xf32, #tpu.memory_space<vmem>>, %arg2: memref<128x128xf32, #tpu.memory_space<vmem>>, %arg3: memref<1x128xf32, #tpu.memory_space<vmem>>, %arg4: memref<128x128xf32, #tpu.memory_space<vmem>>, %arg5: memref<1x128xf32, #tpu.memory_space<vmem>>, %arg6: memref<128x128xf32, #tpu.memory_space<vmem>>, %arg7: memref<1x128xf32, #tpu.memory_space<vmem>>, %arg8: memref<128x128xf32, #tpu.memory_space<vmem>>, %arg9: memref<1x128xf32, #tpu.memory_space<vmem>>, %arg10: memref<8x128xf32, #tpu.memory_space<vmem>>) attributes {dimension_semantics = [#tpu.dimension_semantics<parallel>], iteration_bounds = array<i64: 1>, scalar_prefetch = 0 : i64, scratch_operands = 0 : i64, tpu.core_type = #tpu.core_type<tc>, window_params = [{transform_indices = @transform_0, window_bounds = array<i64: 8, 128>}, {pipeline_mode = #tpu.pipeline_mode<synchronous>, transform_indices = @transform_1, window_bounds = array<i64: 128, 128>}, {pipeline_mode = #tpu.pipeline_mode<synchronous>, transform_indices = @transform_2, window_bounds = array<i64: 1, 128>}, {pipeline_mode = #tpu.pipeline_mode<synchronous>, transform_indices = @transform_3, window_bounds = array<i64: 128, 128>}, {pipeline_mode = #tpu.pipeline_mode<synchronous>, transform_indices = @transform_4, window_bounds = array<i64: 1, 128>}, {pipeline_mode = #tpu.pipeline_mode<synchronous>, transform_indices = @transform_5, window_bounds = array<i64: 128, 128>}, {pipeline_mode = #tpu.pipeline_mode<synchronous>, transform_indices = @transform_6, window_bounds = array<i64: 1, 128>}, {pipeline_mode = #tpu.pipeline_mode<synchronous>, transform_indices = @transform_7, window_bounds = array<i64: 128, 128>}, {pipeline_mode = #tpu.pipeline_mode<synchronous>, transform_indices = @transform_8, window_bounds = array<i64: 1, 128>}, {transform_indices = @transform_9, window_bounds = array<i64: 8, 128>}]} {
    %c0 = arith.constant 0 : index
    %c0_0 = arith.constant 0 : index
    %0 = vector.load %arg1[%c0, %c0_0] : memref<8x128xf32, #tpu.memory_space<vmem>>, vector<8x128xf32>
    %c0_1 = arith.constant 0 : index
    %c0_2 = arith.constant 0 : index
    %1 = vector.load %arg2[%c0_1, %c0_2] : memref<128x128xf32, #tpu.memory_space<vmem>>, vector<128x128xf32>
    %cst = arith.constant dense<0.000000e+00> : vector<8x128xf32>
    %2 = tpu.matmul %0, %1, %cst {dimension_numbers = #tpu.dot_dimension_numbers<[1], [0], [0], [1], [0, 0, 1, 1], [], []>} : vector<8x128xf32>, vector<128x128xf32>, vector<8x128xf32> -> vector<8x128xf32>
    %c0_3 = arith.constant 0 : index
    %c0_4 = arith.constant 0 : index
    %3 = vector.load %arg3[%c0_3, %c0_4] : memref<1x128xf32, #tpu.memory_space<vmem>>, vector<1x128xf32>
    %4 = vector.broadcast %3 : vector<1x128xf32> to vector<8x128xf32>
    %5 = arith.addf %2, %4 : vector<8x128xf32>
    %cst_5 = arith.constant 0.00999999977 : f32
    %6 = vector.broadcast %cst_5 : f32 to vector<8x128xf32>
    %7 = arith.mulf %6, %5 : vector<8x128xf32>
    %8 = arith.maximumf %5, %7 : vector<8x128xf32>
    %c0_6 = arith.constant 0 : index
    %c0_7 = arith.constant 0 : index
    %9 = vector.load %arg4[%c0_6, %c0_7] : memref<128x128xf32, #tpu.memory_space<vmem>>, vector<128x128xf32>
    %cst_8 = arith.constant dense<0.000000e+00> : vector<8x128xf32>
    %10 = tpu.matmul %8, %9, %cst_8 {dimension_numbers = #tpu.dot_dimension_numbers<[1], [0], [0], [1], [0, 0, 1, 1], [], []>} : vector<8x128xf32>, vector<128x128xf32>, vector<8x128xf32> -> vector<8x128xf32>
    %c0_9 = arith.constant 0 : index
    %c0_10 = arith.constant 0 : index
    %11 = vector.load %arg5[%c0_9, %c0_10] : memref<1x128xf32, #tpu.memory_space<vmem>>, vector<1x128xf32>
    %12 = vector.broadcast %11 : vector<1x128xf32> to vector<8x128xf32>
    %13 = arith.addf %10, %12 : vector<8x128xf32>
    %cst_11 = arith.constant 0.00999999977 : f32
    %14 = vector.broadcast %cst_11 : f32 to vector<8x128xf32>
    %15 = arith.mulf %14, %13 : vector<8x128xf32>
    %16 = arith.maximumf %13, %15 : vector<8x128xf32>
    %c0_12 = arith.constant 0 : index
    %c0_13 = arith.constant 0 : index
    %17 = vector.load %arg6[%c0_12, %c0_13] : memref<128x128xf32, #tpu.memory_space<vmem>>, vector<128x128xf32>
    %cst_14 = arith.constant dense<0.000000e+00> : vector<8x128xf32>
    %18 = tpu.matmul %16, %17, %cst_14 {dimension_numbers = #tpu.dot_dimension_numbers<[1], [0], [0], [1], [0, 0, 1, 1], [], []>} : vector<8x128xf32>, vector<128x128xf32>, vector<8x128xf32> -> vector<8x128xf32>
    %c0_15 = arith.constant 0 : index
    %c0_16 = arith.constant 0 : index
    %19 = vector.load %arg7[%c0_15, %c0_16] : memref<1x128xf32, #tpu.memory_space<vmem>>, vector<1x128xf32>
    %20 = vector.broadcast %19 : vector<1x128xf32> to vector<8x128xf32>
    %21 = arith.addf %18, %20 : vector<8x128xf32>
    %cst_17 = arith.constant 0.00999999977 : f32
    %22 = vector.broadcast %cst_17 : f32 to vector<8x128xf32>
    %23 = arith.mulf %22, %21 : vector<8x128xf32>
    %24 = arith.maximumf %21, %23 : vector<8x128xf32>
    %c0_18 = arith.constant 0 : index
    %c0_19 = arith.constant 0 : index
    %25 = vector.load %arg8[%c0_18, %c0_19] : memref<128x128xf32, #tpu.memory_space<vmem>>, vector<128x128xf32>
    %cst_20 = arith.constant dense<0.000000e+00> : vector<8x128xf32>
    %26 = tpu.matmul %24, %25, %cst_20 {dimension_numbers = #tpu.dot_dimension_numbers<[1], [0], [0], [1], [0, 0, 1, 1], [], []>} : vector<8x128xf32>, vector<128x128xf32>, vector<8x128xf32> -> vector<8x128xf32>
    %c0_21 = arith.constant 0 : index
    %c0_22 = arith.constant 0 : index
    %27 = vector.load %arg9[%c0_21, %c0_22] : memref<1x128xf32, #tpu.memory_space<vmem>>, vector<1x128xf32>
    %28 = vector.broadcast %27 : vector<1x128xf32> to vector<8x128xf32>
    %29 = arith.addf %26, %28 : vector<8x128xf32>
    %c0_23 = arith.constant 0 : index
    %c0_24 = arith.constant 0 : index
    %30 = vector.load %arg10[%c0_23, %c0_24] : memref<8x128xf32, #tpu.memory_space<vmem>>, vector<8x128xf32>
    tpu.vector_store %arg10[%c0_23, %c0_24], %29 {strides = array<i32>} : memref<8x128xf32, #tpu.memory_space<vmem>>, vector<8x128xf32>,
    return
  }
  func.func @transform_0(%arg0: i32) -> (i32, i32) {
    %c0_i32 = arith.constant 0 : i32
    %c0_i32_0 = arith.constant 0 : i32
    return %arg0, %c0_i32 : i32, i32
  }
  func.func @transform_1(%arg0: i32) -> (i32, i32) {
    %c0_i32 = arith.constant 0 : i32
    %c0_i32_0 = arith.constant 0 : i32
    %c0_i32_1 = arith.constant 0 : i32
    return %c0_i32, %c0_i32_0 : i32, i32
  }
  func.func @transform_2(%arg0: i32) -> (i32, i32) {
    %c0_i32 = arith.constant 0 : i32
    %c0_i32_0 = arith.constant 0 : i32
    %c0_i32_1 = arith.constant 0 : i32
    return %c0_i32, %c0_i32_0 : i32, i32
  }
  func.func @transform_3(%arg0: i32) -> (i32, i32) {
    %c0_i32 = arith.constant 0 : i32
    %c0_i32_0 = arith.constant 0 : i32
    %c0_i32_1 = arith.constant 0 : i32
    return %c0_i32, %c0_i32_0 : i32, i32
  }
  func.func @transform_4(%arg0: i32) -> (i32, i32) {
    %c0_i32 = arith.constant 0 : i32
    %c0_i32_0 = arith.constant 0 : i32
    %c0_i32_1 = arith.constant 0 : i32
    return %c0_i32, %c0_i32_0 : i32, i32
  }
  func.func @transform_5(%arg0: i32) -> (i32, i32) {
    %c0_i32 = arith.constant 0 : i32
    %c0_i32_0 = arith.constant 0 : i32
    %c0_i32_1 = arith.constant 0 : i32
    return %c0_i32, %c0_i32_0 : i32, i32
  }
  func.func @transform_6(%arg0: i32) -> (i32, i32) {
    %c0_i32 = arith.constant 0 : i32
    %c0_i32_0 = arith.constant 0 : i32
    %c0_i32_1 = arith.constant 0 : i32
    return %c0_i32, %c0_i32_0 : i32, i32
  }
  func.func @transform_7(%arg0: i32) -> (i32, i32) {
    %c0_i32 = arith.constant 0 : i32
    %c0_i32_0 = arith.constant 0 : i32
    %c0_i32_1 = arith.constant 0 : i32
    return %c0_i32, %c0_i32_0 : i32, i32
  }
  func.func @transform_8(%arg0: i32) -> (i32, i32) {
    %c0_i32 = arith.constant 0 : i32
    %c0_i32_0 = arith.constant 0 : i32
    %c0_i32_1 = arith.constant 0 : i32
    return %c0_i32, %c0_i32_0 : i32, i32
  }
  func.func @transform_9(%arg0: i32) -> (i32, i32) {
    %c0_i32 = arith.constant 0 : i32
    %c0_i32_0 = arith.constant 0 : i32
    return %arg0, %c0_i32 : i32, i32
  }
}

</mosaic_0001>

<llo_original>
// kernel: _forward_impl.1
$region0: #{_forward_impl.1}
  #allocation0 [shape = 'u32[]', space=smem, size = 0x4, offset = 0x4, fixed_abs, tag = 'smem constant byte address 0x4 - core index']
  #allocation1 [shape = 'u32[72,128]{1,0:T(1,128)}', space=vmem, size = 0x9000, scoped, tag = 'internal scratch']
  %s0 = inlined_call_operand.vmem [shape: f32[8,128], index: 0, kind: input, shape index: {}]
  %s1 = inlined_call_operand.hbm [shape: f32[128,128], index: 1, kind: input, shape index: {}]
  %s2 = inlined_call_operand.vmem [shape: f32[1,128], index: 2, kind: input, shape index: {}]
  %s3 = inlined_call_operand.hbm [shape: f32[128,128], index: 3, kind: input, shape index: {}]
  %s4 = inlined_call_operand.vmem [shape: f32[1,128], index: 4, kind: input, shape index: {}]
  %s5 = inlined_call_operand.hbm [shape: f32[128,128], index: 5, kind: input, shape index: {}]
  %s6 = inlined_call_operand.vmem [shape: f32[1,128], index: 6, kind: input, shape index: {}]
  %s7 = inlined_call_operand.hbm [shape: f32[128,128], index: 7, kind: input, shape index: {}]
  %s8 = inlined_call_operand.vmem [shape: f32[1,128], index: 8, kind: input, shape index: {}]
  %s9 = inlined_call_operand.hbm [shape: f32[8,128], index: 9, kind: output, shape index: {}]
  %s10 = sld [smem:[#allocation0]]
  $region62: #{_forward_impl.1} parent=0
    _
  %s12 = ssub.s32 1, %s10
  %s13 = scalar_select 0, %s12, %s10
  $region1: #{_forward_impl.1} parent=0
    #allocation2 [shape = 'u8[65536]{0}', space=vmem, size = 0x10000, scoped, tag = 'input window, operand 1, single buffered']
    #allocation3 [shape = 's32[1]{0}', space=sflag, size = 0x4, scoped, tag = 'scoped memory for _forward_impl.1']
    #allocation4 [shape = 's32[1]{0}', space=sflag, size = 0x4, scoped, tag = 'scoped memory for _forward_impl.1']
    #allocation5 [shape = 'u8[65536]{0}', space=vmem, size = 0x10000, scoped, tag = 'input window, operand 3, single buffered']
    #allocation6 [shape = 's32[1]{0}', space=sflag, size = 0x4, scoped, tag = 'scoped memory for _forward_impl.1']
    #allocation7 [shape = 'u8[65536]{0}', space=vmem, size = 0x10000, scoped, tag = 'input window, operand 5, single buffered']
    #allocation8 [shape = 'u8[65536]{0}', space=vmem, size = 0x10000, scoped, tag = 'input window, operand 7, single buffered']
    #allocation9 [shape = 's32[1]{0}', space=sflag, size = 0x4, scoped, tag = 'scoped memory for _forward_impl.1']
    #allocation10 [shape = 'u8[4096]{0}', space=vmem, size = 0x1000, scoped, tag = 'output window, operand 0, single buffered']
    %14 = vsyncpa [#allocation3], 0
    %15 = vsyncpa [#allocation6], 0
    %16 = vsyncpa [#allocation9], 0
    %17 = vsyncpa [#allocation4], 0
    // Predicated region
    $region2: #{_forward_impl.1} parent=1 // pred_check
      _
    $region3: #{_forward_impl.1} parent=1 // pred_check_branch
      %19 = sbr.rel (0) target = $region5
    $region4: #{_forward_impl.1} parent=1 // pred_region
      _
    $region5: #{_forward_impl.1} parent=1 // pred_fallthru
      _
    // Predicated region
    $region6: #{_forward_impl.1} parent=1 // pred_check
      _
    $region7: #{_forward_impl.1} parent=1 // pred_check_branch
      %21 = sbr.rel (0) target = $region9
    $region8: #{_forward_impl.1} parent=1 // pred_region
      %23 = vsyncadd [#allocation3], 0
      %s24 = sshll.u32 %s1, 4
      %s25 = int_to_ptr.hbm [resolvable:$true] %s24
      %s26 = sshll.u32 [#allocation2], 4
      %s27 = int_to_ptr.vmem [resolvable:$true] %s26
      %32 = dma.hbm_to_vmem [thread:$0]  %s25, 2048, %s27, [#allocation3], 128, 128, 8
    $region9: #{_forward_impl.1} parent=1 // pred_fallthru
      _
    // Predicated region
    $region10: #{_forward_impl.1} parent=1 // pred_check
      _
    $region11: #{_forward_impl.1} parent=1 // pred_check_branch
      %34 = sbr.rel (0) target = $region13
    $region12: #{_forward_impl.1} parent=1 // pred_region
      _
    $region13: #{_forward_impl.1} parent=1 // pred_fallthru
      _
    // Predicated region
    $region14: #{_forward_impl.1} parent=1 // pred_check
      _
    $region15: #{_forward_impl.1} parent=1 // pred_check_branch
      %36 = sbr.rel (0) target = $region17
    $region16: #{_forward_impl.1} parent=1 // pred_region
      %38 = vsyncadd [#allocation6], 0
      %s39 = sshll.u32 %s3, 4
      %s40 = int_to_ptr.hbm [resolvable:$true] %s39
      %s41 = sshll.u32 [#allocation5], 4
      %s42 = int_to_ptr.vmem [resolvable:$true] %s41
      %47 = dma.hbm_to_vmem [thread:$0]  %s40, 2048, %s42, [#allocation6], 128, 128, 8
    $region17: #{_forward_impl.1} parent=1 // pred_fallthru
      _
    // Predicated region
    $region18: #{_forward_impl.1} parent=1 // pred_check
      _
    $region19: #{_forward_impl.1} parent=1 // pred_check_branch
      %49 = sbr.rel (0) target = $region21
    $region20: #{_forward_impl.1} parent=1 // pred_region
      _
    $region21: #{_forward_impl.1} parent=1 // pred_fallthru
      _
    // Predicated region
    $region22: #{_forward_impl.1} parent=1 // pred_check
      _
    $region23: #{_forward_impl.1} parent=1 // pred_check_branch
      %51 = sbr.rel (0) target = $region25
    $region24: #{_forward_impl.1} parent=1 // pred_region
      %53 = vsyncadd [#allocation6], 0
      %s54 = sshll.u32 %s5, 4
      %s55 = int_to_ptr.hbm [resolvable:$true] %s54
      %s56 = sshll.u32 [#allocation7], 4
      %s57 = int_to_ptr.vmem [resolvable:$true] %s56
      %62 = dma.hbm_to_vmem [thread:$0]  %s55, 2048, %s57, [#allocation6], 128, 128, 8
    $region25: #{_forward_impl.1} parent=1 // pred_fallthru
      _
    // Predicated region
    $region26: #{_forward_impl.1} parent=1 // pred_check
      _
    $region27: #{_forward_impl.1} parent=1 // pred_check_branch
      %64 = sbr.rel (0) target = $region29
    $region28: #{_forward_impl.1} parent=1 // pred_region
      _
    $region29: #{_forward_impl.1} parent=1 // pred_fallthru
      _
    // Predicated region
    $region30: #{_forward_impl.1} parent=1 // pred_check
      _
    $region31: #{_forward_impl.1} parent=1 // pred_check_branch
      %66 = sbr.rel (0) target = $region33
    $region32: #{_forward_impl.1} parent=1 // pred_region
      %68 = vsyncadd [#allocation9], 0
      %s69 = sshll.u32 %s7, 4
      %s70 = int_to_ptr.hbm [resolvable:$true] %s69
      %s71 = sshll.u32 [#allocation8], 4
      %s72 = int_to_ptr.vmem [resolvable:$true] %s71
      %77 = dma.hbm_to_vmem [thread:$0]  %s70, 2048, %s72, [#allocation9], 128, 128, 8
    $region33: #{_forward_impl.1} parent=1 // pred_fallthru
      _
    // Predicated region
    $region34: #{_forward_impl.1} parent=1 // pred_check
      _
    $region35: #{_forward_impl.1} parent=1 // pred_check_branch
      %79 = sbr.rel (0) target = $region37
    $region36: #{_forward_impl.1} parent=1 // pred_region
      _
    $region37: #{_forward_impl.1} parent=1 // pred_fallthru
      _
    // Predicated region
    $region38: #{_forward_impl.1} parent=1 // pred_check
      _
    $region39: #{_forward_impl.1} parent=1 // pred_check_branch
      %81 = sbr.rel (0) target = $region41
    $region40: #{_forward_impl.1} parent=1 // pred_region
      %83 = dma.done [#allocation3], 2048
    $region41: #{_forward_impl.1} parent=1 // pred_fallthru
      _
    // Predicated region
    $region42: #{_forward_impl.1} parent=1 // pred_check
      _
    $region43: #{_forward_impl.1} parent=1 // pred_check_branch
      %85 = sbr.rel (0) target = $region45
    $region44: #{_forward_impl.1} parent=1 // pred_region
      %87 = dma.done [#allocation6], 2048
    $region45: #{_forward_impl.1} parent=1 // pred_fallthru
      _
    // Predicated region
    $region46: #{_forward_impl.1} parent=1 // pred_check
      _
    $region47: #{_forward_impl.1} parent=1 // pred_check_branch
      %89 = sbr.rel (0) target = $region49
    $region48: #{_forward_impl.1} parent=1 // pred_region
      %91 = dma.done [#allocation6], 2048
    $region49: #{_forward_impl.1} parent=1 // pred_fallthru
      _
    // Predicated region
    $region50: #{_forward_impl.1} parent=1 // pred_check
      _
    $region51: #{_forward_impl.1} parent=1 // pred_check_branch
      %93 = sbr.rel (0) target = $region53
    $region52: #{_forward_impl.1} parent=1 // pred_region
      %95 = dma.done [#allocation9], 2048
    $region53: #{_forward_impl.1} parent=1 // pred_fallthru
      _
    %v96 = vld [vmem:[%s0] sm:$0xff]
    %v97 = vld [vmem:[#allocation2] sm:$0xff]
    %v98 = vld [vmem:[#allocation2 + $0x8] sm:$0xff]
    %v99 = vld [vmem:[#allocation2 + $0x10] sm:$0xff]
    %v100 = vld [vmem:[#allocation2 + $0x18] sm:$0xff]
    %v101 = vld [vmem:[#allocation2 + $0x20] sm:$0xff]
    %v102 = vld [vmem:[#allocation2 + $0x28] sm:$0xff]
    %v103 = vld [vmem:[#allocation2 + $0x30] sm:$0xff]
    %v104 = vld [vmem:[#allocation2 + $0x38] sm:$0xff]
    %v105 = vld [vmem:[#allocation2 + $0x40] sm:$0xff]
    %v106 = vld [vmem:[#allocation2 + $0x48] sm:$0xff]
    %v107 = vld [vmem:[#allocation2 + $0x50] sm:$0xff]
    %v108 = vld [vmem:[#allocation2 + $0x58] sm:$0xff]
    %v109 = vld [vmem:[#allocation2 + $0x60] sm:$0xff]
    %v110 = vld [vmem:[#allocation2 + $0x68] sm:$0xff]
    %v111 = vld [vmem:[#allocation2 + $0x70] sm:$0xff]
    %v112 = vld [vmem:[#allocation2 + $0x78] sm:$0xff]
    %v113 = vld [vmem:[%s2] sm:$0x1]
    %v115 = vperm.slane %v113, 0
    %117 = vmatpush.msra.mxu0 %v112
    %118 = vmatpush.msra.mxu0 %v111
    %119 = vmatpush.msra.mxu0 %v110
    %120 = vmatpush.msra.mxu0 %v109
    %121 = vmatpush.msra.mxu0 %v108
    %122 = vmatpush.msra.mxu0 %v107
    %123 = vmatpush.msra.mxu0 %v106
    %124 = vmatpush.msra.mxu0 %v105
    %125 = vmatpush.msra.mxu0 %v104
    %126 = vmatpush.msra.mxu0 %v103
    %127 = vmatpush.msra.mxu0 %v102
    %128 = vmatpush.msra.mxu0 %v101
    %129 = vmatpush.msra.mxu0 %v100
    %130 = vmatpush.msra.mxu0 %v99
    %131 = vmatpush.msra.mxu0 %v98
    %132 = vmatpush.msra.mxu0 %v97
    %133 = vmatmul.f32.gmra.mxu0 %v96
    %v134 = vpop.f32.mrf.mxu0
    %v135 = vadd.f32 %v115, %v134
    %136 = vdwg.mxu0
    %v137 = vmul.f32 %v135, 0.01
    %v138 = vmax.f32 %v135, %v137
    %v139 = vld [vmem:[#allocation5] sm:$0xff]
    %v140 = vld [vmem:[#allocation5 + $0x8] sm:$0xff]
    %v141 = vld [vmem:[#allocation5 + $0x10] sm:$0xff]
    %v142 = vld [vmem:[#allocation5 + $0x18] sm:$0xff]
    %v143 = vld [vmem:[#allocation5 + $0x20] sm:$0xff]
    %v144 = vld [vmem:[#allocation5 + $0x28] sm:$0xff]
    %v145 = vld [vmem:[#allocation5 + $0x30] sm:$0xff]
    %v146 = vld [vmem:[#allocation5 + $0x38] sm:$0xff]
    %v147 = vld [vmem:[#allocation5 + $0x40] sm:$0xff]
    %v148 = vld [vmem:[#allocation5 + $0x48] sm:$0xff]
    %v149 = vld [vmem:[#allocation5 + $0x50] sm:$0xff]
    %v150 = vld [vmem:[#allocation5 + $0x58] sm:$0xff]
    %v151 = vld [vmem:[#allocation5 + $0x60] sm:$0xff]
    %v152 = vld [vmem:[#allocation5 + $0x68] sm:$0xff]
    %v153 = vld [vmem:[#allocation5 + $0x70] sm:$0xff]
    %v154 = vld [vmem:[#allocation5 + $0x78] sm:$0xff]
    %v155 = vld [vmem:[%s4] sm:$0x1]
    %v157 = vperm.slane %v155, 0
    %159 = vmatpush.msra.mxu0 %v154
    %160 = vmatpush.msra.mxu0 %v153
    %161 = vmatpush.msra.mxu0 %v152
    %162 = vmatpush.msra.mxu0 %v151
    %163 = vmatpush.msra.mxu0 %v150
    %164 = vmatpush.msra.mxu0 %v149
    %165 = vmatpush.msra.mxu0 %v148
    %166 = vmatpush.msra.mxu0 %v147
    %167 = vmatpush.msra.mxu0 %v146
    %168 = vmatpush.msra.mxu0 %v145
    %169 = vmatpush.msra.mxu0 %v144
    %170 = vmatpush.msra.mxu0 %v143
    %171 = vmatpush.msra.mxu0 %v142
    %172 = vmatpush.msra.mxu0 %v141
    %173 = vmatpush.msra.mxu0 %v140
    %174 = vmatpush.msra.mxu0 %v139
    %175 = vmatmul.f32.gmra.mxu0 %v138
    %v176 = vpop.f32.mrf.mxu0
    %v177 = vadd.f32 %v157, %v176
    %178 = vdwg.mxu0
    %v179 = vmul.f32 %v177, 0.01
    %v180 = vmax.f32 %v177, %v179
    %v181 = vld [vmem:[#allocation7] sm:$0xff]
    %v182 = vld [vmem:[#allocation7 + $0x8] sm:$0xff]
    %v183 = vld [vmem:[#allocation7 + $0x10] sm:$0xff]
    %v184 = vld [vmem:[#allocation7 + $0x18] sm:$0xff]
    %v185 = vld [vmem:[#allocation7 + $0x20] sm:$0xff]
    %v186 = vld [vmem:[#allocation7 + $0x28] sm:$0xff]
    %v187 = vld [vmem:[#allocation7 + $0x30] sm:$0xff]
    %v188 = vld [vmem:[#allocation7 + $0x38] sm:$0xff]
    %v189 = vld [vmem:[#allocation7 + $0x40] sm:$0xff]
    %v190 = vld [vmem:[#allocation7 + $0x48] sm:$0xff]
    %v191 = vld [vmem:[#allocation7 + $0x50] sm:$0xff]
    %v192 = vld [vmem:[#allocation7 + $0x58] sm:$0xff]
    %v193 = vld [vmem:[#allocation7 + $0x60] sm:$0xff]
    %v194 = vld [vmem:[#allocation7 + $0x68] sm:$0xff]
    %v195 = vld [vmem:[#allocation7 + $0x70] sm:$0xff]
    %v196 = vld [vmem:[#allocation7 + $0x78] sm:$0xff]
    %v197 = vld [vmem:[%s6] sm:$0x1]
    %v199 = vperm.slane %v197, 0
    %201 = vmatpush.msra.mxu0 %v196
    %202 = vmatpush.msra.mxu0 %v195
    %203 = vmatpush.msra.mxu0 %v194
    %204 = vmatpush.msra.mxu0 %v193
    %205 = vmatpush.msra.mxu0 %v192
    %206 = vmatpush.msra.mxu0 %v191
    %207 = vmatpush.msra.mxu0 %v190
    %208 = vmatpush.msra.mxu0 %v189
    %209 = vmatpush.msra.mxu0 %v188
    %210 = vmatpush.msra.mxu0 %v187
    %211 = vmatpush.msra.mxu0 %v186
    %212 = vmatpush.msra.mxu0 %v185
    %213 = vmatpush.msra.mxu0 %v184
    %214 = vmatpush.msra.mxu0 %v183
    %215 = vmatpush.msra.mxu0 %v182
    %216 = vmatpush.msra.mxu0 %v181
    %217 = vmatmul.f32.gmra.mxu0 %v180
    %v218 = vpop.f32.mrf.mxu0
    %v219 = vadd.f32 %v199, %v218
    %220 = vdwg.mxu0
    %v221 = vmul.f32 %v219, 0.01
    %v222 = vmax.f32 %v219, %v221
    %v223 = vld [vmem:[#allocation8] sm:$0xff]
    %v224 = vld [vmem:[#allocation8 + $0x8] sm:$0xff]
    %v225 = vld [vmem:[#allocation8 + $0x10] sm:$0xff]
    %v226 = vld [vmem:[#allocation8 + $0x18] sm:$0xff]
    %v227 = vld [vmem:[#allocation8 + $0x20] sm:$0xff]
    %v228 = vld [vmem:[#allocation8 + $0x28] sm:$0xff]
    %v229 = vld [vmem:[#allocation8 + $0x30] sm:$0xff]
    %v230 = vld [vmem:[#allocation8 + $0x38] sm:$0xff]
    %v231 = vld [vmem:[#allocation8 + $0x40] sm:$0xff]
    %v232 = vld [vmem:[#allocation8 + $0x48] sm:$0xff]
    %v233 = vld [vmem:[#allocation8 + $0x50] sm:$0xff]
    %v234 = vld [vmem:[#allocation8 + $0x58] sm:$0xff]
    %v235 = vld [vmem:[#allocation8 + $0x60] sm:$0xff]
    %v236 = vld [vmem:[#allocation8 + $0x68] sm:$0xff]
    %v237 = vld [vmem:[#allocation8 + $0x70] sm:$0xff]
    %v238 = vld [vmem:[#allocation8 + $0x78] sm:$0xff]
    %v239 = vld [vmem:[%s8] sm:$0x1]
    %v241 = vperm.slane %v239, 0
    %243 = vmatpush.msra.mxu0 %v238
    %244 = vmatpush.msra.mxu0 %v237
    %245 = vmatpush.msra.mxu0 %v236
    %246 = vmatpush.msra.mxu0 %v235
    %247 = vmatpush.msra.mxu0 %v234
    %248 = vmatpush.msra.mxu0 %v233
    %249 = vmatpush.msra.mxu0 %v232
    %250 = vmatpush.msra.mxu0 %v231
    %251 = vmatpush.msra.mxu0 %v230
    %252 = vmatpush.msra.mxu0 %v229
    %253 = vmatpush.msra.mxu0 %v228
    %254 = vmatpush.msra.mxu0 %v227
    %255 = vmatpush.msra.mxu0 %v226
    %256 = vmatpush.msra.mxu0 %v225
    %257 = vmatpush.msra.mxu0 %v224
    %258 = vmatpush.msra.mxu0 %v223
    %259 = vmatmul.f32.gmra.mxu0 %v222
    %v260 = vpop.f32.mrf.mxu0
    %v261 = vadd.f32 %v241, %v260
    %262 = vdwg.mxu0
    %263 = vst [vmem:[#allocation10] sm:$0xff] %v261
    // Predicated region
    $region54: #{_forward_impl.1} parent=1 // pred_check
      _
    $region55: #{_forward_impl.1} parent=1 // pred_check_branch
      %265 = sbr.rel (0) target = $region57
    $region56: #{_forward_impl.1} parent=1 // pred_region
      %267 = vsyncadd [#allocation4], 0
      %s269 = sshll.u32 [#allocation10], 4
      %s270 = int_to_ptr.vmem [resolvable:$true] %s269
      %s271 = sshll.u32 %s9, 4
      %s272 = int_to_ptr.hbm [resolvable:$true] %s271
      %274 = dma.vmem_to_hbm [thread:$0]  %s270, 128, %s272, [#allocation4]
    $region57: #{_forward_impl.1} parent=1 // pred_fallthru
      _
    // Predicated region
    $region58: #{_forward_impl.1} parent=1 // pred_check
      _
    $region59: #{_forward_impl.1} parent=1 // pred_check_branch
      %276 = sbr.rel (0) target = $region61
    $region60: #{_forward_impl.1} parent=1 // pred_region
      %278 = dma.done [#allocation4], 128
    $region61: #{_forward_impl.1} parent=1 // pred_fallthru
      _
    %279 = vsyncpa [#allocation3], 1
    %280 = vsyncpa [#allocation6], 1
    %281 = vsyncpa [#allocation9], 1
    %282 = vsyncpa [#allocation4], 1

</llo_original>
